<compile_context>
chip_gen: v5e
topology: v5e:2x2
jax: 0.10.0
libtpu: 0.0.40
codegen_flags: <defaults>
</compile_context>

<pallas_src>
import jax
import jax.numpy as jnp
from jax.experimental import pallas as pl
from jax.experimental.pallas import tpu as pltpu


def _ltc_kernel(x_ref, h_ref, w_in_ref, w_rec_ref, b_ref, inv_tau_ref, out_ref):
    """One fused LTC step on a (batch-tile) block.

    x_ref:       (Bt, I)   input,   original dtype
    h_ref:       (Bt, H)   h_prev,  original dtype
    w_in_ref:    (I, H)    W_in^T,  compute dtype (f32 or bf16)
    w_rec_ref:   (H, H)    W_rec^T, compute dtype
    b_ref:       (1, H)    b_in + b_rec, f32
    inv_tau_ref: (1, H)    1 / tau,      f32
    out_ref:     (Bt, H)   h_new, dtype of h_prev
    """
    cd = w_in_ref.dtype
    # Two MXU matmuls (f32 accumulation) + fused bias.  Total MXU work equals
    # the single fused K=(I+H) matmul but needs no wrapper-side concatenation.
    pre = (jnp.dot(x_ref[...].astype(cd), w_in_ref[...],
                   preferred_element_type=jnp.float32)
           + jnp.dot(h_ref[...].astype(cd), w_rec_ref[...],
                     preferred_element_type=jnp.float32)
           + b_ref[...])
    t = jnp.tanh(pre)                               # EUP
    h = h_ref[...].astype(jnp.float32)              # VPU blend in f32
    out_ref[...] = (h + (t - h) * inv_tau_ref[...]).astype(out_ref.dtype)


def prepare_ltc_params(w_in, b_in, w_rec, b_rec, tau, *,
                       compute_dtype=jnp.float32):
    """One-time parameter transform (NOT in the per-step hot path).

    PyTorch nn.Linear convention: w_in (H, I), b_in (H,), w_rec (H, H),
    b_rec (H,), tau (H,).
    Returns (w_in_t, w_rec_t, bias, inv_tau) ready for the kernel.
    """
    H, I = w_in.shape
    assert w_rec.shape == (H, H)
    w_in_t = w_in.T.astype(compute_dtype)                       # (I, H)
    w_rec_t = w_rec.T.astype(compute_dtype)                     # (H, H)
    bias = (b_in + b_rec).reshape(1, H).astype(jnp.float32)     # (1, H)
    inv_tau = (1.0 / tau).reshape(1, H).astype(jnp.float32)     # (1, H)
    return w_in_t, w_rec_t, bias, inv_tau


def liquid_time_constant_forward(x, h_prev, w_in_t, w_rec_t, bias, inv_tau, *,
                                 block_b=None):
    """x: (B, I), h_prev: (B, H)  ->  h_new: (B, H) in h_prev.dtype."""
    B, H = h_prev.shape
    I = x.shape[1]
    out_shape = jax.ShapeDtypeStruct((B, H), h_prev.dtype)

    if block_b is None or B <= block_b or B % block_b != 0:
        # Single-shot: whole problem resident in VMEM (fine up to ~10^7 elems).
        vmem = pl.BlockSpec(memory_space=pltpu.MemorySpace.VMEM)
        return pl.pallas_call(
            _ltc_kernel,
            out_shape=out_shape,
            in_specs=[vmem] * 6,
            out_specs=vmem,
        )(x, h_prev, w_in_t, w_rec_t, bias, inv_tau)

    # Batch-tiled grid: weights / bias / 1-tau resident (constant index_map),
    # activations pipelined tile-by-tile, tiles sharded across TCs.
    grid = (B // block_b,)
    return pl.pallas_call(
        _ltc_kernel,
        out_shape=out_shape,
        grid_spec=pltpu.PrefetchScalarGridSpec(
            num_scalar_prefetch=0,
            grid=grid,
            in_specs=[
                pl.BlockSpec((block_b, I), lambda i: (i, 0)),   # x
                pl.BlockSpec((block_b, H), lambda i: (i, 0)),   # h_prev
                pl.BlockSpec((I, H), lambda i: (0, 0)),         # W_in^T (resident)
                pl.BlockSpec((H, H), lambda i: (0, 0)),         # W_rec^T (resident)
                pl.BlockSpec((1, H), lambda i: (0, 0)),         # bias   (resident)
                pl.BlockSpec((1, H), lambda i: (0, 0)),         # 1/tau  (resident)
            ],
            out_specs=pl.BlockSpec((block_b, H), lambda i: (i, 0)),
        ),
        compiler_params=pltpu.CompilerParams(
            dimension_semantics=("parallel",)),
    )(x, h_prev, w_in_t, w_rec_t, bias, inv_tau)


if __name__ == "__main__":
    # Small shapes consistent with the module: batch=8, input_size=32, hidden=64.
    B, I, H = 8, 32, 64
    key = jax.random.PRNGKey(0)
    kx, kh, kwi, kbi, kwr, kbr, kt, kxl, khl = jax.random.split(key, 9)

    x = jax.random.normal(kx, (B, I), dtype=jnp.float32)
    h_prev = jax.random.normal(kh, (B, H), dtype=jnp.float32)

    # PyTorch-style uniform init for the Linears; tau is a learnable parameter
    # (initialized to 1.0 in the module) — use a spread of values to exercise
    # the division path.
    w_in = jax.random.uniform(kwi, (H, I), minval=-1.0 / jnp.sqrt(I),
                              maxval=1.0 / jnp.sqrt(I), dtype=jnp.float32)
    b_in = jax.random.uniform(kbi, (H,), minval=-1.0 / jnp.sqrt(I),
                              maxval=1.0 / jnp.sqrt(I), dtype=jnp.float32)
    w_rec = jax.random.uniform(kwr, (H, H), minval=-1.0 / jnp.sqrt(H),
                               maxval=1.0 / jnp.sqrt(H), dtype=jnp.float32)
    b_rec = jax.random.uniform(kbr, (H,), minval=-1.0 / jnp.sqrt(H),
                               maxval=1.0 / jnp.sqrt(H), dtype=jnp.float32)
    tau = jax.random.uniform(kt, (H,), minval=0.5, maxval=2.0, dtype=jnp.float32)

    def reference(x, h, w_in, b_in, w_rec, b_rec, tau):
        return h + (jnp.tanh(x @ w_in.T + b_in + h @ w_rec.T + b_rec) - h) / tau

    ref = reference(x, h_prev, w_in, b_in, w_rec, b_rec, tau)

    fwd = jax.jit(liquid_time_constant_forward, static_argnames=("block_b",))

    # f32 path — tight tolerance.
    p32 = prepare_ltc_params(w_in, b_in, w_rec, b_rec, tau,
                             compute_dtype=jnp.float32)
    h_new = jax.block_until_ready(fwd(x, h_prev, *p32))
    assert h_new.shape == (B, H) and h_new.dtype == h_prev.dtype
    assert jnp.allclose(h_new, ref, atol=1e-5, rtol=1e-5), "f32 mismatch vs reference"

    # bf16 matmul-operand path (MXU-native weights, f32 accumulation) — loose tol.
    p16 = prepare_ltc_params(w_in, b_in, w_rec, b_rec, tau,
                             compute_dtype=jnp.bfloat16)
    h_new_bf16 = jax.block_until_ready(fwd(x, h_prev, *p16))
    assert h_new_bf16.shape == (B, H) and h_new_bf16.dtype == h_prev.dtype
    assert jnp.allclose(h_new_bf16, ref, atol=5e-2, rtol=5e-2), "bf16 mismatch vs reference"

    # Batch-tiled grid path (weights resident, batch pipelined over tiles).
    BL = 256
    xL = jax.random.normal(kxl, (BL, I), dtype=jnp.float32)
    hL = jax.random.normal(khl, (BL, H), dtype=jnp.float32)
    refL = reference(xL, hL, w_in, b_in, w_rec, b_rec, tau)
    outL = jax.block_until_ready(fwd(xL, hL, *p32, block_b=128))
    assert outL.shape == (BL, H)
    assert jnp.allclose(outL, refL, atol=1e-5, rtol=1e-5), "tiled-grid mismatch vs reference"

    print("KERNEL_OK")
</pallas_src>

<mosaic_0001>
module attributes {stable_mosaic.version = 11 : i64} {
  func.func @_ltc_kernel(%arg0: memref<8x32xf32, #tpu.memory_space<vmem>>, %arg1: memref<8x64xf32, #tpu.memory_space<vmem>>, %arg2: memref<32x64xf32, #tpu.memory_space<vmem>>, %arg3: memref<64x64xf32, #tpu.memory_space<vmem>>, %arg4: memref<1x64xf32, #tpu.memory_space<vmem>>, %arg5: memref<1x64xf32, #tpu.memory_space<vmem>>, %arg6: memref<8x64xf32, #tpu.memory_space<vmem>>) attributes {dimension_semantics = [], scalar_prefetch = 0 : i64, scratch_operands = 0 : i64, tpu.core_type = #tpu.core_type<tc>} {
    %c0 = arith.constant 0 : index
    %c0_0 = arith.constant 0 : index
    %0 = vector.load %arg0[%c0, %c0_0] : memref<8x32xf32, #tpu.memory_space<vmem>>, vector<8x32xf32>
    %c0_1 = arith.constant 0 : index
    %c0_2 = arith.constant 0 : index
    %1 = vector.load %arg2[%c0_1, %c0_2] : memref<32x64xf32, #tpu.memory_space<vmem>>, vector<32x64xf32>
    %cst = arith.constant dense<0.000000e+00> : vector<8x64xf32>
    %2 = tpu.matmul %0, %1, %cst {dimension_numbers = #tpu.dot_dimension_numbers<[1], [0], [0], [1], [0, 0, 1, 1], [], []>} : vector<8x32xf32>, vector<32x64xf32>, vector<8x64xf32> -> vector<8x64xf32>
    %c0_3 = arith.constant 0 : index
    %c0_4 = arith.constant 0 : index
    %3 = vector.load %arg1[%c0_3, %c0_4] : memref<8x64xf32, #tpu.memory_space<vmem>>, vector<8x64xf32>
    %c0_5 = arith.constant 0 : index
    %c0_6 = arith.constant 0 : index
    %4 = vector.load %arg3[%c0_5, %c0_6] : memref<64x64xf32, #tpu.memory_space<vmem>>, vector<64x64xf32>
    %cst_7 = arith.constant dense<0.000000e+00> : vector<8x64xf32>
    %5 = tpu.matmul %3, %4, %cst_7 {dimension_numbers = #tpu.dot_dimension_numbers<[1], [0], [0], [1], [0, 0, 1, 1], [], []>} : vector<8x64xf32>, vector<64x64xf32>, vector<8x64xf32> -> vector<8x64xf32>
    %6 = arith.addf %2, %5 : vector<8x64xf32>
    %c0_8 = arith.constant 0 : index
    %c0_9 = arith.constant 0 : index
    %7 = vector.load %arg4[%c0_8, %c0_9] : memref<1x64xf32, #tpu.memory_space<vmem>>, vector<1x64xf32>
    %8 = vector.broadcast %7 : vector<1x64xf32> to vector<8x64xf32>
    %9 = arith.addf %6, %8 : vector<8x64xf32>
    %10 = math.tanh %9 : vector<8x64xf32>
    %c0_10 = arith.constant 0 : index
    %c0_11 = arith.constant 0 : index
    %11 = vector.load %arg1[%c0_10, %c0_11] : memref<8x64xf32, #tpu.memory_space<vmem>>, vector<8x64xf32>
    %12 = arith.subf %10, %11 : vector<8x64xf32>
    %c0_12 = arith.constant 0 : index
    %c0_13 = arith.constant 0 : index
    %13 = vector.load %arg5[%c0_12, %c0_13] : memref<1x64xf32, #tpu.memory_space<vmem>>, vector<1x64xf32>
    %14 = vector.broadcast %13 : vector<1x64xf32> to vector<8x64xf32>
    %15 = arith.mulf %12, %14 : vector<8x64xf32>
    %16 = arith.addf %11, %15 : vector<8x64xf32>
    %c0_14 = arith.constant 0 : index
    %c0_15 = arith.constant 0 : index
    %17 = vector.load %arg6[%c0_14, %c0_15] : memref<8x64xf32, #tpu.memory_space<vmem>>, vector<8x64xf32>
    tpu.vector_store %arg6[%c0_14, %c0_15], %16 {strides = array<i32>} : memref<8x64xf32, #tpu.memory_space<vmem>>, vector<8x64xf32>,
    return
  }
}

</mosaic_0001>

<llo_original>
// kernel: liquid_time_constant_forward.1
$region0: #{liquid_time_constant_forward.1}
  #allocation0 [shape = 'u32[]', space=smem, size = 0x4, offset = 0x4, fixed_abs, tag = 'smem constant byte address 0x4 - core index']
  #allocation1 [shape = 'u32[72,128]{1,0:T(1,128)}', space=vmem, size = 0x9000, scoped, tag = 'internal scratch']
  %s0 = inlined_call_operand.hbm [shape: f32[8,32], index: 0, kind: input, shape index: {}]
  %s1 = inlined_call_operand.hbm [shape: f32[8,64], index: 1, kind: input, shape index: {}]
  %s2 = inlined_call_operand.hbm [shape: f32[32,64], index: 2, kind: input, shape index: {}]
  %s3 = inlined_call_operand.hbm [shape: f32[64,64], index: 3, kind: input, shape index: {}]
  %s4 = inlined_call_operand.vmem [shape: f32[1,64], index: 4, kind: input, shape index: {}]
  %s5 = inlined_call_operand.vmem [shape: f32[1,64], index: 5, kind: input, shape index: {}]
  %s6 = inlined_call_operand.hbm [shape: f32[8,64], index: 6, kind: output, shape index: {}]
  %s7 = sld [smem:[#allocation0]]
  $region50: #{liquid_time_constant_forward.1} parent=0
    _
  %s9 = ssub.s32 1, %s7
  %s10 = scalar_select 0, %s9, %s7
  $region1: #{liquid_time_constant_forward.1} parent=0
    #allocation2 [shape = 'u8[4096]{0}', space=vmem, size = 0x1000, scoped, tag = 'input window, operand 0, single buffered']
    #allocation3 [shape = 's32[1]{0}', space=sflag, size = 0x4, scoped, tag = 'scoped memory for liquid_time_constant_forward.1']
    #allocation4 [shape = 's32[1]{0}', space=sflag, size = 0x4, scoped, tag = 'scoped memory for liquid_time_constant_forward.1']
    #allocation5 [shape = 'u8[4096]{0}', space=vmem, size = 0x1000, scoped, tag = 'input window, operand 1, single buffered']
    #allocation6 [shape = 's32[1]{0}', space=sflag, size = 0x4, scoped, tag = 'scoped memory for liquid_time_constant_forward.1']
    #allocation7 [shape = 'u8[16384]{0}', space=vmem, size = 0x4000, scoped, tag = 'input window, operand 2, single buffered']
    #allocation8 [shape = 'u8[32768]{0}', space=vmem, size = 0x8000, scoped, tag = 'input window, operand 3, single buffered']
    #allocation9 [shape = 's32[1]{0}', space=sflag, size = 0x4, scoped, tag = 'scoped memory for liquid_time_constant_forward.1']
    #allocation10 [shape = 'u8[4096]{0}', space=vmem, size = 0x1000, scoped, tag = 'output window, operand 0, single buffered']
    %11 = vsyncpa [#allocation3], 0
    %12 = vsyncpa [#allocation6], 0
    %13 = vsyncpa [#allocation9], 0
    %14 = vsyncpa [#allocation4], 0
    // Predicated region
    $region2: #{liquid_time_constant_forward.1} parent=1 // pred_check
      _
    $region3: #{liquid_time_constant_forward.1} parent=1 // pred_check_branch
      %16 = sbr.rel (0) target = $region5
    $region4: #{liquid_time_constant_forward.1} parent=1 // pred_region
      %18 = vsyncadd [#allocation3], 0
      %s20 = sshll.u32 %s0, 4
      %s21 = int_to_ptr.hbm [resolvable:$true] %s20
      %s22 = sshll.u32 [#allocation2], 4
      %s23 = int_to_ptr.vmem [resolvable:$true] %s22
      %25 = dma.hbm_to_vmem [thread:$0]  %s21, 128, %s23, [#allocation3]
    $region5: #{liquid_time_constant_forward.1} parent=1 // pred_fallthru
      _
    // Predicated region
    $region6: #{liquid_time_constant_forward.1} parent=1 // pred_check
      _
    $region7: #{liquid_time_constant_forward.1} parent=1 // pred_check_branch
      %27 = sbr.rel (0) target = $region9
    $region8: #{liquid_time_constant_forward.1} parent=1 // pred_region
      %29 = vsyncadd [#allocation6], 0
      %s31 = sshll.u32 %s1, 4
      %s32 = int_to_ptr.hbm [resolvable:$true] %s31
      %s33 = sshll.u32 [#allocation5], 4
      %s34 = int_to_ptr.vmem [resolvable:$true] %s33
      %36 = dma.hbm_to_vmem [thread:$0]  %s32, 128, %s34, [#allocation6]
    $region9: #{liquid_time_constant_forward.1} parent=1 // pred_fallthru
      _
    // Predicated region
    $region10: #{liquid_time_constant_forward.1} parent=1 // pred_check
      _
    $region11: #{liquid_time_constant_forward.1} parent=1 // pred_check_branch
      %38 = sbr.rel (0) target = $region13
    $region12: #{liquid_time_constant_forward.1} parent=1 // pred_region
      %40 = vsyncadd [#allocation6], 0
      %s41 = sshll.u32 %s2, 4
      %s42 = int_to_ptr.hbm [resolvable:$true] %s41
      %s43 = sshll.u32 [#allocation7], 4
      %s44 = int_to_ptr.vmem [resolvable:$true] %s43
      %49 = dma.hbm_to_vmem [thread:$0]  %s42, 512, %s44, [#allocation6], 128, 128, 8
    $region13: #{liquid_time_constant_forward.1} parent=1 // pred_fallthru
      _
    // Predicated region
    $region14: #{liquid_time_constant_forward.1} parent=1 // pred_check
      _
    $region15: #{liquid_time_constant_forward.1} parent=1 // pred_check_branch
      %51 = sbr.rel (0) target = $region17
    $region16: #{liquid_time_constant_forward.1} parent=1 // pred_region
      %53 = vsyncadd [#allocation9], 0
      %s54 = sshll.u32 %s3, 4
      %s55 = int_to_ptr.hbm [resolvable:$true] %s54
      %s56 = sshll.u32 [#allocation8], 4
      %s57 = int_to_ptr.vmem [resolvable:$true] %s56
      %62 = dma.hbm_to_vmem [thread:$0]  %s55, 1024, %s57, [#allocation9], 128, 128, 8
    $region17: #{liquid_time_constant_forward.1} parent=1 // pred_fallthru
      _
    // Predicated region
    $region18: #{liquid_time_constant_forward.1} parent=1 // pred_check
      _
    $region19: #{liquid_time_constant_forward.1} parent=1 // pred_check_branch
      %64 = sbr.rel (0) target = $region21
    $region20: #{liquid_time_constant_forward.1} parent=1 // pred_region
      _
    $region21: #{liquid_time_constant_forward.1} parent=1 // pred_fallthru
      _
    // Predicated region
    $region22: #{liquid_time_constant_forward.1} parent=1 // pred_check
      _
    $region23: #{liquid_time_constant_forward.1} parent=1 // pred_check_branch
      %66 = sbr.rel (0) target = $region25
    $region24: #{liquid_time_constant_forward.1} parent=1 // pred_region
      _
    $region25: #{liquid_time_constant_forward.1} parent=1 // pred_fallthru
      _
    // Predicated region
    $region26: #{liquid_time_constant_forward.1} parent=1 // pred_check
      _
    $region27: #{liquid_time_constant_forward.1} parent=1 // pred_check_branch
      %68 = sbr.rel (0) target = $region29
    $region28: #{liquid_time_constant_forward.1} parent=1 // pred_region
      %70 = dma.done [#allocation3], 128
    $region29: #{liquid_time_constant_forward.1} parent=1 // pred_fallthru
      _
    // Predicated region
    $region30: #{liquid_time_constant_forward.1} parent=1 // pred_check
      _
    $region31: #{liquid_time_constant_forward.1} parent=1 // pred_check_branch
      %72 = sbr.rel (0) target = $region33
    $region32: #{liquid_time_constant_forward.1} parent=1 // pred_region
      %74 = dma.done [#allocation6], 128
    $region33: #{liquid_time_constant_forward.1} parent=1 // pred_fallthru
      _
    // Predicated region
    $region34: #{liquid_time_constant_forward.1} parent=1 // pred_check
      _
    $region35: #{liquid_time_constant_forward.1} parent=1 // pred_check_branch
      %76 = sbr.rel (0) target = $region37
    $region36: #{liquid_time_constant_forward.1} parent=1 // pred_region
      %78 = dma.done [#allocation6], 512
    $region37: #{liquid_time_constant_forward.1} parent=1 // pred_fallthru
      _
    // Predicated region
    $region38: #{liquid_time_constant_forward.1} parent=1 // pred_check
      _
    $region39: #{liquid_time_constant_forward.1} parent=1 // pred_check_branch
      %80 = sbr.rel (0) target = $region41
    $region40: #{liquid_time_constant_forward.1} parent=1 // pred_region
      %82 = dma.done [#allocation9], 1024
    $region41: #{liquid_time_constant_forward.1} parent=1 // pred_fallthru
      _
    %v83 = vld [vmem:[#allocation2] sm:$0xff]
    %v84 = vld [vmem:[#allocation7] sm:$0xff]
    %v85 = vld [vmem:[#allocation7 + $0x8] sm:$0xff]
    %v86 = vld [vmem:[#allocation7 + $0x10] sm:$0xff]
    %v87 = vld [vmem:[#allocation7 + $0x18] sm:$0xff]
    %v88 = vld [vmem:[#allocation5] sm:$0xff]
    %v89 = vld [vmem:[#allocation8] sm:$0xff]
    %v90 = vld [vmem:[#allocation8 + $0x8] sm:$0xff]
    %v91 = vld [vmem:[#allocation8 + $0x10] sm:$0xff]
    %v92 = vld [vmem:[#allocation8 + $0x18] sm:$0xff]
    %v93 = vld [vmem:[#allocation8 + $0x20] sm:$0xff]
    %v94 = vld [vmem:[#allocation8 + $0x28] sm:$0xff]
    %v95 = vld [vmem:[#allocation8 + $0x30] sm:$0xff]
    %v96 = vld [vmem:[#allocation8 + $0x38] sm:$0xff]
    %vm97 = vcmask 523264
    %v99 = vsel %vm97, %v88, 0
    %101 = vmatpush.msra.mxu0 0.0
    %102 = vmatpush.msra.mxu0 0.0
    %103 = vmatpush.msra.mxu0 0.0
    %104 = vmatpush.msra.mxu0 0.0
    %105 = vmatpush.msra.mxu0 0.0
    %106 = vmatpush.msra.mxu0 0.0
    %107 = vmatpush.msra.mxu0 0.0
    %108 = vmatpush.msra.mxu0 0.0
    %109 = vmatpush.msra.mxu0 %v96
    %110 = vmatpush.msra.mxu0 %v95
    %111 = vmatpush.msra.mxu0 %v94
    %112 = vmatpush.msra.mxu0 %v93
    %113 = vmatpush.msra.mxu0 %v92
    %114 = vmatpush.msra.mxu0 %v91
    %115 = vmatpush.msra.mxu0 %v90
    %116 = vmatpush.msra.mxu0 %v89
    %117 = vmatmul.f32.gmra.mxu0 %v99
    %v118 = vpop.f32.mrf.mxu0
    %v119 = vadd.f32 0.0, %v118
    %120 = vdwg.mxu0
    %vm121 = vcmask 261120
    %v123 = vsel %vm121, %v83, 0
    %125 = vmatpush.msra.mxu0 0.0
    %126 = vmatpush.msra.mxu0 0.0
    %127 = vmatpush.msra.mxu0 0.0
    %128 = vmatpush.msra.mxu0 0.0
    %129 = vmatpush.msra.mxu0 0.0
    %130 = vmatpush.msra.mxu0 0.0
    %131 = vmatpush.msra.mxu0 0.0
    %132 = vmatpush.msra.mxu0 0.0
    %133 = vmatpush.msra.mxu0 0.0
    %134 = vmatpush.msra.mxu0 0.0
    %135 = vmatpush.msra.mxu0 0.0
    %136 = vmatpush.msra.mxu0 0.0
    %137 = vmatpush.msra.mxu0 %v87
    %138 = vmatpush.msra.mxu0 %v86
    %139 = vmatpush.msra.mxu0 %v85
    %140 = vmatpush.msra.mxu0 %v84
    %141 = vmatmul.f32.gmra.mxu0 %v123
    %v142 = vpop.f32.mrf.mxu0
    %v143 = vadd.f32 %v119, %v142
    %144 = vdwg.mxu0
    %v145 = vld [vmem:[%s4] sm:$0x1]
    %v147 = vperm.slane %v145, 0
    %v149 = vadd.f32 %v143, %v147
    %v150 = vtanh.pop %v149
    %v151 = vsub.f32 %v150, %v88
    %v152 = vld [vmem:[%s5] sm:$0x1]
    %v154 = vperm.slane %v152, 0
    %v156 = vmul.f32 %v151, %v154
    %v157 = vadd.f32 %v88, %v156
    %158 = vst.msk [vmem:[#allocation10] sm:$0xff] %vm97, %v157
    // Predicated region
    $region42: #{liquid_time_constant_forward.1} parent=1 // pred_check
      _
    $region43: #{liquid_time_constant_forward.1} parent=1 // pred_check_branch
      %160 = sbr.rel (0) target = $region45
    $region44: #{liquid_time_constant_forward.1} parent=1 // pred_region
      %162 = vsyncadd [#allocation4], 0
      %s164 = sshll.u32 [#allocation10], 4
      %s165 = int_to_ptr.vmem [resolvable:$true] %s164
      %s166 = sshll.u32 %s6, 4
      %s167 = int_to_ptr.hbm [resolvable:$true] %s166
      %169 = dma.vmem_to_hbm [thread:$0]  %s165, 128, %s167, [#allocation4]
    $region45: #{liquid_time_constant_forward.1} parent=1 // pred_fallthru
      _
    // Predicated region
    $region46: #{liquid_time_constant_forward.1} parent=1 // pred_check
      _
    $region47: #{liquid_time_constant_forward.1} parent=1 // pred_check_branch
      %171 = sbr.rel (0) target = $region49
    $region48: #{liquid_time_constant_forward.1} parent=1 // pred_region
      %173 = dma.done [#allocation4], 128
    $region49: #{liquid_time_constant_forward.1} parent=1 // pred_fallthru
      _
    %174 = vsyncpa [#allocation3], 1
    %175 = vsyncpa [#allocation6], 1
    %176 = vsyncpa [#allocation9], 1
    %177 = vsyncpa [#allocation4], 1

</llo_original>
